<compile_context>
chip_gen: v7x
topology: tpu7x:2x2x1
jax: 0.10.0
libtpu: 0.0.40
codegen_flags: <defaults>
</compile_context>

<pallas_src>
import functools
import math

import jax
import jax.numpy as jnp
from jax import lax
from jax.experimental import pallas as pl
from jax.experimental.pallas import tpu as pltpu

_MIB = 1024 * 1024


def _sdpa_kernel(q_ref, k_ref, v_ref, mask_ref, ctx_ref, attn_ref, *, scale):
    # Each ref holds one (batch, head, q-tile) block: shapes (1, 1, ., .).
    q = q_ref[0, 0]            # (TQ, d_k)  native dtype
    k = k_ref[0, 0]            # (Lk, d_k)  native dtype
    v = v_ref[0, 0]            # (Lk, d_v)  native dtype
    m = mask_ref[0, 0]         # (TQ, Lk)   int8

    # Fold 1/sqrt(d_k) into the (TQ, d_k) Q tile: Lk/d_k fewer VPU multiplies
    # than scaling the (TQ, Lk) scores tile afterwards.
    q = q * jnp.asarray(scale, dtype=q.dtype)

    # scores = (Q/sqrt(d_k)) @ K^T: contract the last dim of both operands
    # directly (NT form, no materialized K transpose / XLU relayout),
    # accumulate in f32 on the MXU.
    scores = lax.dot_general(
        q, k,
        dimension_numbers=(((1,), (1,)), ((), ())),
        preferred_element_type=jnp.float32,
    )

    # masked_fill_(attn_mask, -1e9)
    scores = jnp.where(m != 0, jnp.float32(-1.0e9), scores)

    # Numerically-stable softmax over the key axis (matches nn.Softmax(dim=-1)).
    # Exact division: the returned attn must match a reference softmax tightly
    # (the approx EUP reciprocal is not accurate enough for the attn output).
    smax = jnp.max(scores, axis=-1, keepdims=True)
    e = jnp.exp(scores - smax)
    denom = jnp.sum(e, axis=-1, keepdims=True)
    attn = e / denom

    # context = attn @ V  (probs cast to V dtype; f32 accumulation on the MXU).
    ctx = jnp.dot(attn.astype(v.dtype), v, preferred_element_type=jnp.float32)

    attn_ref[0, 0] = attn.astype(attn_ref.dtype)
    ctx_ref[0, 0] = ctx.astype(ctx_ref.dtype)


def _vmem_capacity_bytes():
    """Per-TensorCore VMEM capacity; conservative 64 MiB (v7x) if unknown."""
    try:
        return int(pltpu.get_tpu_info().vmem_capacity_bytes)
    except Exception:
        return 64 * _MIB


def _block_vmem_need(tq, lk, dk, dv, esz, attn_esz, kv_bufs):
    """Estimated VMEM footprint of one pipelined grid step."""
    return (
        2 * tq * dk * esz                 # Q tile (double-buffered)
        + kv_bufs * lk * (dk + dv) * esz  # K + V (single- or double-buffered)
        + 2 * tq * lk * 1                 # mask tile, int8 (double-buffered)
        + 2 * tq * dv * esz               # ctx tile (double-buffered)
        + 2 * tq * lk * attn_esz          # attn output tile (double-buffered)
        + 3 * tq * lk * 4                 # f32 temporaries: scores, e, attn
    )


def _pick_q_tile(lq, lk, dk, dv, esz, attn_esz, kv_bufs, budget_bytes):
    """Largest multiple-of-32 q-tile dividing Lq that fits the VMEM budget."""
    candidates = [c for c in (512, 256, 128, 64, 32) if c <= lq and lq % c == 0]
    if not candidates:
        return lq  # tiny / odd Lq: full-extent block is legal
    for tq in candidates:
        if _block_vmem_need(tq, lk, dk, dv, esz, attn_esz, kv_bufs) <= budget_bytes:
            return tq
    return candidates[-1]  # best effort: smallest tile


def _kv_block_spec(block_shape, index_map, single_buffer):
    if single_buffer:
        try:
            return pl.BlockSpec(block_shape, index_map,
                                pipeline_mode=pl.Buffered(1))
        except TypeError:  # older Pallas without pipeline_mode kwarg
            pass
    return pl.BlockSpec(block_shape, index_map)


def scaled_dot_product_attention(Q, K, V, attn_mask, d_k=None, attn_dtype=None):
    B, H, Lq, dk = Q.shape
    _, _, Lk, dv = V.shape
    assert K.shape == (B, H, Lk, dk)
    assert attn_mask.shape == (B, H, Lq, Lk)
    if d_k is None:
        d_k = dk
    assert d_k == dk, "softmax scale d_k must match Q head dim"

    # Attention-probability output dtype follows Q (bf16 callers get a 2x
    # smaller writeback stream); softmax math stays in f32 inside the kernel.
    attn_dtype = Q.dtype if attn_dtype is None else jnp.dtype(attn_dtype)

    esz = jnp.dtype(Q.dtype).itemsize
    attn_esz = jnp.dtype(attn_dtype).itemsize
    scale = 1.0 / math.sqrt(float(d_k))

    # Generation-aware VMEM accounting.
    vmem_cap = _vmem_capacity_bytes()
    budget = int(0.4 * vmem_cap)          # ~25 MiB on v7x, ~51 MiB on v5e/v6e

    # K/V block indices are invariant across the inner qi axis; single-buffer
    # them when they are big (re-fetch only happens at (b, h) boundaries).
    kv_bytes = Lk * (dk + dv) * esz
    kv_single = kv_bytes > 4 * _MIB
    kv_bufs = 1 if kv_single else 2

    TQ = _pick_q_tile(Lq, Lk, dk, dv, esz, attn_esz, kv_bufs, budget)
    nq = Lq // TQ

    need = _block_vmem_need(TQ, Lk, dk, dv, esz, attn_esz, kv_bufs)
    headroom = 8 * _MIB
    vmem_limit = int(min(vmem_cap - headroom, max(32 * _MIB, need + headroom)))
    vmem_limit = max(vmem_limit, 16 * _MIB)

    # Narrow mask dtype: int8 payload instead of bool/int32.
    mask_i8 = attn_mask.astype(jnp.int8)

    kernel = functools.partial(_sdpa_kernel, scale=scale)

    ctx, attn = pl.pallas_call(
        kernel,
        out_shape=(
            jax.ShapeDtypeStruct((B, H, Lq, dv), Q.dtype),
            jax.ShapeDtypeStruct((B, H, Lq, Lk), attn_dtype),
        ),
        grid_spec=pltpu.PrefetchScalarGridSpec(
            num_scalar_prefetch=0,
            grid=(B, H, nq),
            in_specs=[
                pl.BlockSpec((1, 1, TQ, dk), lambda b, h, qi: (b, h, qi, 0)),
                _kv_block_spec((1, 1, Lk, dk), lambda b, h, qi: (b, h, 0, 0),
                               kv_single),
                _kv_block_spec((1, 1, Lk, dv), lambda b, h, qi: (b, h, 0, 0),
                               kv_single),
                pl.BlockSpec((1, 1, TQ, Lk), lambda b, h, qi: (b, h, qi, 0)),
            ],
            out_specs=[
                pl.BlockSpec((1, 1, TQ, dv), lambda b, h, qi: (b, h, qi, 0)),
                pl.BlockSpec((1, 1, TQ, Lk), lambda b, h, qi: (b, h, qi, 0)),
            ],
        ),
        compiler_params=pltpu.CompilerParams(
            dimension_semantics=("parallel", "parallel", "parallel"),
            vmem_limit_bytes=vmem_limit,
        ),
    )(Q, K, V, mask_i8)
    return ctx, attn
    # TODO(synk): ctx's dv=64 minor dim forces masked partial stores; a
    # lane-dense [B, Lq, H*dv] output layout would help a few percent if the
    # caller's layout can be negotiated.  A flash-style streaming formulation
    # (dropping the [B,H,Lq,Lk] attn output entirely) is the only way to beat
    # the attn-writeback roofline, but the module's API requires returning attn.


def _reference(Q, K, V, attn_mask, d_k):
    scores = jnp.einsum("bhqd,bhkd->bhqk", Q, K) / jnp.sqrt(jnp.float32(d_k))
    scores = jnp.where(attn_mask, jnp.float32(-1.0e9), scores)
    attn = jax.nn.softmax(scores, axis=-1)
    ctx = jnp.einsum("bhqk,bhkd->bhqd", attn, V)
    return ctx, attn


if __name__ == "__main__":
    B, H, Lq, Lk, DK, DV = 2, 2, 128, 128, 64, 64
    key = jax.random.PRNGKey(0)
    kq, kk, kv, km = jax.random.split(key, 4)

    Q = jax.random.normal(kq, (B, H, Lq, DK), dtype=jnp.float32)
    K = jax.random.normal(kk, (B, H, Lk, DK), dtype=jnp.float32)
    V = jax.random.normal(kv, (B, H, Lk, DV), dtype=jnp.float32)
    # Random boolean mask (True => masked), like the PyTorch attn_mask.
    attn_mask = jax.random.bernoulli(km, p=0.25, shape=(B, H, Lq, Lk))

    ctx, attn = scaled_dot_product_attention(Q, K, V, attn_mask)
    jax.block_until_ready((ctx, attn))

    ctx_ref, attn_ref = _reference(Q, K, V, attn_mask, d_k=DK)
    assert jnp.allclose(ctx, ctx_ref, atol=2e-3, rtol=2e-3), \
        float(jnp.max(jnp.abs(ctx - ctx_ref)))
    assert jnp.allclose(attn, attn_ref, atol=1e-3, rtol=1e-3), \
        float(jnp.max(jnp.abs(attn - attn_ref)))

    print("KERNEL_OK")
</pallas_src>

<mosaic_0001>
module attributes {stable_mosaic.version = 11 : i64} {
  func.func @_sdpa_kernel(%arg0: i32, %arg1: i32, %arg2: i32, %arg3: memref<1x1x128x64xf32, #tpu.memory_space<vmem>>, %arg4: memref<1x1x128x64xf32, #tpu.memory_space<vmem>>, %arg5: memref<1x1x128x64xf32, #tpu.memory_space<vmem>>, %arg6: memref<1x1x128x128xi8, #tpu.memory_space<vmem>>, %arg7: memref<1x1x128x64xf32, #tpu.memory_space<vmem>>, %arg8: memref<1x1x128x128xf32, #tpu.memory_space<vmem>>) attributes {dimension_semantics = [#tpu.dimension_semantics<parallel>, #tpu.dimension_semantics<parallel>, #tpu.dimension_semantics<parallel>], iteration_bounds = array<i64: 2, 2, 1>, scalar_prefetch = 0 : i64, scratch_operands = 0 : i64, tpu.core_type = #tpu.core_type<tc>, window_params = [{transform_indices = @transform_0, window_bounds = array<i64: 1, 1, 128, 64>}, {transform_indices = @transform_1, window_bounds = array<i64: 1, 1, 128, 64>}, {transform_indices = @transform_2, window_bounds = array<i64: 1, 1, 128, 64>}, {transform_indices = @transform_3, window_bounds = array<i64: 1, 1, 128, 128>}, {transform_indices = @transform_4, window_bounds = array<i64: 1, 1, 128, 64>}, {transform_indices = @transform_5, window_bounds = array<i64: 1, 1, 128, 128>}]} {
    %c0 = arith.constant 0 : index
    %c0_0 = arith.constant 0 : index
    %c0_1 = arith.constant 0 : index
    %c0_2 = arith.constant 0 : index
    %0 = vector.load %arg3[%c0, %c0_0, %c0_1, %c0_2] : memref<1x1x128x64xf32, #tpu.memory_space<vmem>>, vector<1x1x128x64xf32>
    %1 = vector.shape_cast %0 : vector<1x1x128x64xf32> to vector<128x64xf32>
    %c0_3 = arith.constant 0 : index
    %c0_4 = arith.constant 0 : index
    %c0_5 = arith.constant 0 : index
    %c0_6 = arith.constant 0 : index
    %2 = vector.load %arg4[%c0_3, %c0_4, %c0_5, %c0_6] : memref<1x1x128x64xf32, #tpu.memory_space<vmem>>, vector<1x1x128x64xf32>
    %3 = vector.shape_cast %2 : vector<1x1x128x64xf32> to vector<128x64xf32>
    %c0_7 = arith.constant 0 : index
    %c0_8 = arith.constant 0 : index
    %c0_9 = arith.constant 0 : index
    %c0_10 = arith.constant 0 : index
    %4 = vector.load %arg5[%c0_7, %c0_8, %c0_9, %c0_10] : memref<1x1x128x64xf32, #tpu.memory_space<vmem>>, vector<1x1x128x64xf32>
    %5 = vector.shape_cast %4 : vector<1x1x128x64xf32> to vector<128x64xf32>
    %c0_11 = arith.constant 0 : index
    %c0_12 = arith.constant 0 : index
    %c0_13 = arith.constant 0 : index
    %c0_14 = arith.constant 0 : index
    %6 = vector.load %arg6[%c0_11, %c0_12, %c0_13, %c0_14] : memref<1x1x128x128xi8, #tpu.memory_space<vmem>>, vector<1x1x128x128xi8>
    %7 = vector.shape_cast %6 : vector<1x1x128x128xi8> to vector<128x128xi8>
    %cst = arith.constant 1.250000e-01 : f32
    %8 = vector.broadcast %cst : f32 to vector<128x64xf32>
    %9 = arith.mulf %1, %8 : vector<128x64xf32>
    %cst_15 = arith.constant dense<0.000000e+00> : vector<128x128xf32>
    %10 = tpu.matmul %9, %3, %cst_15 {dimension_numbers = #tpu.dot_dimension_numbers<[1], [1], [0], [0], [0, 0, 1, 0], [], []>} : vector<128x64xf32>, vector<128x64xf32>, vector<128x128xf32> -> vector<128x128xf32>
    %c0_i8 = arith.constant 0 : i8
    %11 = vector.broadcast %c0_i8 : i8 to vector<128x128xi8>
    %12 = arith.cmpi ne, %7, %11 : vector<128x128xi8>
    %cst_16 = arith.constant -1.000000e+09 : f32
    %13 = vector.broadcast %cst_16 : f32 to vector<128x128xf32>
    %14 = arith.select %12, %13, %10 : vector<128x128xi1>, vector<128x128xf32>
    %cst_17 = arith.constant dense<0xFF800000> : vector<128xf32>
    %15 = vector.multi_reduction <maximumf>, %14, %cst_17 [1] : vector<128x128xf32> to vector<128xf32>
    %16 = vector.shape_cast %15 : vector<128xf32> to vector<128x1xf32>
    %17 = vector.broadcast %16 : vector<128x1xf32> to vector<128x128xf32>
    %18 = arith.subf %14, %17 : vector<128x128xf32>
    %19 = math.exp %18 : vector<128x128xf32>
    %cst_18 = arith.constant dense<0.000000e+00> : vector<128xf32>
    %20 = vector.multi_reduction <add>, %19, %cst_18 [1] : vector<128x128xf32> to vector<128xf32>
    %21 = vector.shape_cast %20 : vector<128xf32> to vector<128x1xf32>
    %22 = vector.broadcast %21 : vector<128x1xf32> to vector<128x128xf32>
    %23 = arith.divf %19, %22 : vector<128x128xf32>
    %cst_19 = arith.constant dense<0.000000e+00> : vector<128x64xf32>
    %24 = tpu.matmul %23, %5, %cst_19 {dimension_numbers = #tpu.dot_dimension_numbers<[1], [0], [0], [1], [0, 0, 1, 1], [], []>} : vector<128x128xf32>, vector<128x64xf32>, vector<128x64xf32> -> vector<128x64xf32>
    %c0_20 = arith.constant 0 : index
    %c0_21 = arith.constant 0 : index
    %c0_22 = arith.constant 0 : index
    %c0_23 = arith.constant 0 : index
    %25 = vector.load %arg8[%c0_20, %c0_21, %c0_22, %c0_23] : memref<1x1x128x128xf32, #tpu.memory_space<vmem>>, vector<1x1x128x128xf32>
    %26 = vector.shape_cast %25 : vector<1x1x128x128xf32> to vector<128x128xf32>
    %27 = vector.shape_cast %23 : vector<128x128xf32> to vector<1x1x128x128xf32>
    tpu.vector_store %arg8[%c0_20, %c0_21, %c0_22, %c0_23], %27 {strides = array<i32>} : memref<1x1x128x128xf32, #tpu.memory_space<vmem>>, vector<1x1x128x128xf32>,
    %c0_24 = arith.constant 0 : index
    %c0_25 = arith.constant 0 : index
    %c0_26 = arith.constant 0 : index
    %c0_27 = arith.constant 0 : index
    %28 = vector.load %arg7[%c0_24, %c0_25, %c0_26, %c0_27] : memref<1x1x128x64xf32, #tpu.memory_space<vmem>>, vector<1x1x128x64xf32>
    %29 = vector.shape_cast %28 : vector<1x1x128x64xf32> to vector<128x64xf32>
    %30 = vector.shape_cast %24 : vector<128x64xf32> to vector<1x1x128x64xf32>
    tpu.vector_store %arg7[%c0_24, %c0_25, %c0_26, %c0_27], %30 {strides = array<i32>} : memref<1x1x128x64xf32, #tpu.memory_space<vmem>>, vector<1x1x128x64xf32>,
    return
  }
  func.func @transform_0(%arg0: i32, %arg1: i32, %arg2: i32) -> (i32, i32, i32, i32) {
    %c0_i32 = arith.constant 0 : i32
    %c0_i32_0 = arith.constant 0 : i32
    return %arg0, %arg1, %arg2, %c0_i32 : i32, i32, i32, i32
  }
  func.func @transform_1(%arg0: i32, %arg1: i32, %arg2: i32) -> (i32, i32, i32, i32) {
    %c0_i32 = arith.constant 0 : i32
    %c0_i32_0 = arith.constant 0 : i32
    %c0_i32_1 = arith.constant 0 : i32
    return %arg0, %arg1, %c0_i32, %c0_i32_0 : i32, i32, i32, i32
  }
  func.func @transform_2(%arg0: i32, %arg1: i32, %arg2: i32) -> (i32, i32, i32, i32) {
    %c0_i32 = arith.constant 0 : i32
    %c0_i32_0 = arith.constant 0 : i32
    %c0_i32_1 = arith.constant 0 : i32
    return %arg0, %arg1, %c0_i32, %c0_i32_0 : i32, i32, i32, i32
  }
  func.func @transform_3(%arg0: i32, %arg1: i32, %arg2: i32) -> (i32, i32, i32, i32) {
    %c0_i32 = arith.constant 0 : i32
    %c0_i32_0 = arith.constant 0 : i32
    return %arg0, %arg1, %arg2, %c0_i32 : i32, i32, i32, i32
  }
  func.func @transform_4(%arg0: i32, %arg1: i32, %arg2: i32) -> (i32, i32, i32, i32) {
    %c0_i32 = arith.constant 0 : i32
    %c0_i32_0 = arith.constant 0 : i32
    return %arg0, %arg1, %arg2, %c0_i32 : i32, i32, i32, i32
  }
  func.func @transform_5(%arg0: i32, %arg1: i32, %arg2: i32) -> (i32, i32, i32, i32) {
    %c0_i32 = arith.constant 0 : i32
    %c0_i32_0 = arith.constant 0 : i32
    return %arg0, %arg1, %arg2, %c0_i32 : i32, i32, i32, i32
  }
}

</mosaic_0001>

<llo_original>
// kernel: tpu_custom_call.1
$region0: #{tpu_custom_call.1}
  #allocation0 [shape = 'u32[]', space=smem, size = 0x4, offset = 0x4, fixed_abs, tag = 'smem constant byte address 0x4 - core index']
  #allocation1 [shape = 'u32[144,128]{1,0:T(1,128)}', space=vmem, size = 0x12000, scoped, tag = 'internal scratch']
  %s0 = inlined_call_operand.vmem [shape: f32[2,2,128,64], index: 0, kind: input, shape index: {}]
  %s1 = inlined_call_operand.vmem [shape: f32[2,2,128,64], index: 1, kind: input, shape index: {}]
  %s2 = inlined_call_operand.vmem [shape: f32[2,2,128,64], index: 2, kind: input, shape index: {}]
  %s3 = inlined_call_operand.vmem [shape: s8[2,2,128,128], index: 3, kind: input, shape index: {}]
  %s4 = inlined_call_operand.vmem [shape: f32[2,2,128,64], index: 4, kind: output, shape index: {0}]
  %s5 = inlined_call_operand.hbm [shape: f32[2,2,128,128], index: 5, kind: output, shape index: {1}]
  %6 = xla_tuple %s4, %s5
  %s7 = sld [smem:[#allocation0]]
  $region57: #{tpu_custom_call.1} parent=0
    _
  %s9 = ssub.s32 1, %s7
  %s10 = scalar_select 0, %s9, %s7
  $region1: #{tpu_custom_call.1} parent=0
    #allocation2 [shape = 'u8[131072]{0}', space=vmem, size = 0x20000, scoped, tag = 'output window, operand 1']
    #allocation3 [shape = 's32[2]{0}', space=sflag, size = 0x8, scoped, tag = 'scoped memory for tpu_custom_call.1']
    %11 = vsyncpa [#allocation3], 0
    %s12 = scalar_lea.sflag [#allocation3], 1
    %13 = vsyncpa %s12, 0
    loop: start=0, step=1, limit=6
    $region2: #{tpu_custom_call.1} parent=1 // loop_pre_header
      _
    $region3: #{tpu_custom_call.1} parent=1 // loop_header
      %s15 = sphi 0, %s19
      %p16 = scmp.ge.s32.totalorder %s15, 6
      %s22 = sphi 0, %s41
      %s23 = sphi 0, %s37
      %s24 = sphi 0, %s33
      %s25 = sphi 0, %s22
      %s26 = sphi 0, %s23
      %s27 = sphi 0, %s24
      %s28 = sphi 0, %s25
      %s29 = sphi 0, %s26
      %s30 = sphi 0, %s27
      %s48 = sphi 0, %s50
      %s51 = sphi 0, %s48
      %s52 = sphi 0, %s51
      %s68 = sphi 0, %s52
      %s76 = sphi 0, %s78
      %s79 = sphi 0, %s76
      %s80 = sphi 0, %s79
      %s96 = sphi 0, %s80
      %s104 = sphi 0, %s106
      %s107 = sphi 0, %s104
      %s108 = sphi 0, %s107
      %s124 = sphi 0, %s108
      %s134 = sphi 0, %s136
      %s137 = sphi 0, %s134
      %s138 = sphi 0, %s137
      %s154 = sphi 0, %s138
      %s164 = sphi 0, %s166
      %s167 = sphi 0, %s164
      %s168 = sphi 0, %s167
      %s184 = sphi 0, %s168
      %s194 = sphi 0, %s196
      %s197 = sphi 0, %s194
      %s198 = sphi 0, %s197
      %s214 = sphi 0, %s198
    $region4: #{tpu_custom_call.1} parent=1 // loop_header_branch
      %18 = sbr.rel (%p16) target = $region8
    $region5: #{tpu_custom_call.1} parent=1 // loop_body
      %s20 = ssub.s32 %s15, 1
      %s21 = ssub.s32 %s15, 2
      %s31 = sadd.s32 1, %s24
      %p32 = scmp.ge.s32.totalorder %s31, 1
      %s33 = scalar_select %p32, 0, %s31
      %s34 = sadd.s32 1, %s23
      %s35 = scalar_select %p32, %s34, %s23
      %p36 = scmp.ge.s32.totalorder %s35, 2
      %s37 = scalar_select %p36, 0, %s35
      %s38 = sadd.s32 1, %s22
      %s39 = scalar_select %p36, %s38, %s22
      %p40 = scmp.ge.s32.totalorder %s39, 2
      %s41 = scalar_select %p40, 0, %s39
      %s42 = ssub.s32 %s22, %s41
      %s43 = ssub.s32 %s23, %s37
      %s44 = sor.u32 %s42, %s43
      %s45 = ssub.s32 %s24, %s33
      %s46 = sor.u32 %s44, %s45
      %p47 = scmp.eq.s32.totalorder %s46, 0
      %s49 = sadd.s32 %s48, 1
      %s50 = scalar_select %p47, %s48, %s49
      %p53 = pneg %p47
      %p54 = scmp.eq.s32.totalorder %s15, 3
      %p55 = por %p53, %p54
      %p56 = scmp.ne.s32.totalorder %s48, %s51
      %p57 = scmp.eq.s32.totalorder %s15, 0
      %p58 = por %p56, %p57
      %p59 = scmp.ne.s32.totalorder %s48, %s51
      %p60 = scmp.eq.s32.totalorder %s20, 3
      %p61 = por %p59, %p60
      %p62 = scmp.ne.s32.totalorder %s51, %s52
      %p63 = scmp.eq.s32.totalorder %s20, 0
      %p64 = por %p62, %p63
      %p65 = scmp.ne.s32.totalorder %s51, %s52
      %p66 = scmp.eq.s32.totalorder %s21, 3
      %p67 = por %p65, %p66
      %p69 = scmp.ne.s32.totalorder %s52, %s68
      %p70 = scmp.eq.s32.totalorder %s21, 0
      %p71 = por %p69, %p70
      %s72 = ssub.s32 %s22, %s41
      %s73 = ssub.s32 %s23, %s37
      %s74 = sor.u32 %s72, %s73
      %p75 = scmp.eq.s32.totalorder %s74, 0
      %s77 = sadd.s32 %s76, 1
      %s78 = scalar_select %p75, %s76, %s77
      %p81 = pneg %p75
      %p82 = scmp.eq.s32.totalorder %s15, 3
      %p83 = por %p81, %p82
      %p84 = scmp.ne.s32.totalorder %s76, %s79
      %p85 = scmp.eq.s32.totalorder %s15, 0
      %p86 = por %p84, %p85
      %p87 = scmp.ne.s32.totalorder %s76, %s79
      %p88 = scmp.eq.s32.totalorder %s20, 3
      %p89 = por %p87, %p88
      %p90 = scmp.ne.s32.totalorder %s79, %s80
      %p91 = scmp.eq.s32.totalorder %s20, 0
      %p92 = por %p90, %p91
      %p93 = scmp.ne.s32.totalorder %s79, %s80
      %p94 = scmp.eq.s32.totalorder %s21, 3
      %p95 = por %p93, %p94
      %p97 = scmp.ne.s32.totalorder %s80, %s96
      %p98 = scmp.eq.s32.totalorder %s21, 0
      %p99 = por %p97, %p98
      %s100 = ssub.s32 %s22, %s41
      %s101 = ssub.s32 %s23, %s37
      %s102 = sor.u32 %s100, %s101
      %p103 = scmp.eq.s32.totalorder %s102, 0
      %s105 = sadd.s32 %s104, 1
      %s106 = scalar_select %p103, %s104, %s105
      %p109 = pneg %p103
      %p110 = scmp.eq.s32.totalorder %s15, 3
      %p111 = por %p109, %p110
      %p112 = scmp.ne.s32.totalorder %s104, %s107
      %p113 = scmp.eq.s32.totalorder %s15, 0
      %p114 = por %p112, %p113
      %p115 = scmp.ne.s32.totalorder %s104, %s107
      %p116 = scmp.eq.s32.totalorder %s20, 3
      %p117 = por %p115, %p116
      %p118 = scmp.ne.s32.totalorder %s107, %s108
      %p119 = scmp.eq.s32.totalorder %s20, 0
      %p120 = por %p118, %p119
      %p121 = scmp.ne.s32.totalorder %s107, %s108
      %p122 = scmp.eq.s32.totalorder %s21, 3
      %p123 = por %p121, %p122
      %p125 = scmp.ne.s32.totalorder %s108, %s124
      %p126 = scmp.eq.s32.totalorder %s21, 0
      %p127 = por %p125, %p126
      %s128 = ssub.s32 %s22, %s41
      %s129 = ssub.s32 %s23, %s37
      %s130 = sor.u32 %s128, %s129
      %s131 = ssub.s32 %s24, %s33
      %s132 = sor.u32 %s130, %s131
      %p133 = scmp.eq.s32.totalorder %s132, 0
      %s135 = sadd.s32 %s134, 1
      %s136 = scalar_select %p133, %s134, %s135
      %p139 = pneg %p133
      %p140 = scmp.eq.s32.totalorder %s15, 3
      %p141 = por %p139, %p140
      %p142 = scmp.ne.s32.totalorder %s134, %s137
      %p143 = scmp.eq.s32.totalorder %s15, 0
      %p144 = por %p142, %p143
      %p145 = scmp.ne.s32.totalorder %s134, %s137
      %p146 = scmp.eq.s32.totalorder %s20, 3
      %p147 = por %p145, %p146
      %p148 = scmp.ne.s32.totalorder %s137, %s138
      %p149 = scmp.eq.s32.totalorder %s20, 0
      %p150 = por %p148, %p149
      %p151 = scmp.ne.s32.totalorder %s137, %s138
      %p152 = scmp.eq.s32.totalorder %s21, 3
      %p153 = por %p151, %p152
      %p155 = scmp.ne.s32.totalorder %s138, %s154
      %p156 = scmp.eq.s32.totalorder %s21, 0
      %p157 = por %p155, %p156
      %s158 = ssub.s32 %s22, %s41
      %s159 = ssub.s32 %s23, %s37
      %s160 = sor.u32 %s158, %s159
      %s161 = ssub.s32 %s24, %s33
      %s162 = sor.u32 %s160, %s161
      %p163 = scmp.eq.s32.totalorder %s162, 0
      %s165 = sadd.s32 %s164, 1
      %s166 = scalar_select %p163, %s164, %s165
      %p169 = pneg %p163
      %p170 = scmp.eq.s32.totalorder %s15, 3
      %p171 = por %p169, %p170
      %p172 = scmp.ne.s32.totalorder %s164, %s167
      %p173 = scmp.eq.s32.totalorder %s15, 0
      %p174 = por %p172, %p173
      %p175 = scmp.ne.s32.totalorder %s164, %s167
      %p176 = scmp.eq.s32.totalorder %s20, 3
      %p177 = por %p175, %p176
      %p178 = scmp.ne.s32.totalorder %s167, %s168
      %p179 = scmp.eq.s32.totalorder %s20, 0
      %p180 = por %p178, %p179
      %p181 = scmp.ne.s32.totalorder %s167, %s168
      %p182 = scmp.eq.s32.totalorder %s21, 3
      %p183 = por %p181, %p182
      %p185 = scmp.ne.s32.totalorder %s168, %s184
      %p186 = scmp.eq.s32.totalorder %s21, 0
      %p187 = por %p185, %p186
      %s188 = ssub.s32 %s22, %s41
      %s189 = ssub.s32 %s23, %s37
      %s190 = sor.u32 %s188, %s189
      %s191 = ssub.s32 %s24, %s33
      %s192 = sor.u32 %s190, %s191
      %p193 = scmp.eq.s32.totalorder %s192, 0
      %s195 = sadd.s32 %s194, 1
      %s196 = scalar_select %p193, %s194, %s195
      %p199 = pneg %p193
      %p200 = scmp.eq.s32.totalorder %s15, 3
      %p201 = por %p199, %p200
      %p202 = scmp.ne.s32.totalorder %s194, %s197
      %p203 = scmp.eq.s32.totalorder %s15, 0
      %p204 = por %p202, %p203
      %p205 = scmp.ne.s32.totalorder %s194, %s197
      %p206 = scmp.eq.s32.totalorder %s20, 3
      %p207 = por %p205, %p206
      %p208 = scmp.ne.s32.totalorder %s197, %s198
      %p209 = scmp.eq.s32.totalorder %s20, 0
      %p210 = por %p208, %p209
      %p211 = scmp.ne.s32.totalorder %s197, %s198
      %p212 = scmp.eq.s32.totalorder %s21, 3
      %p213 = por %p211, %p212
      %p215 = scmp.ne.s32.totalorder %s198, %s214
      %p216 = scmp.eq.s32.totalorder %s21, 0
      %p217 = por %p215, %p216
      %p218 = scmp.le.s32.totalorder 1, %s15
      %p219 = scmp.lt.s32.totalorder %s15, 5
      %p220 = pnand %p218, %p219
      %p221 = pneg %p220
      // Predicated region
      $region9: #{tpu_custom_call.1} parent=5 // pred_check
        _
      $region10: #{tpu_custom_call.1} parent=5 // pred_check_branch
        %223 = sbr.rel (%p220) target = $region12
      $region11: #{tpu_custom_call.1} parent=5 // pred_region
        %s224 = ssub.s32 %s15, 1
      $region12: #{tpu_custom_call.1} parent=5 // pred_fallthru
        _
      %p225 = scmp.lt.s32.totalorder %s15, 4
      // Predicated region
      $region13: #{tpu_custom_call.1} parent=5 // pred_check
        %p226 = pneg %p225
      $region14: #{tpu_custom_call.1} parent=5 // pred_check_branch
        %228 = sbr.rel (%p226) target = $region16
      $region15: #{tpu_custom_call.1} parent=5 // pred_region
        // Predicated region
        $region17: #{tpu_custom_call.1} parent=15 // pred_check
          %p229 = pneg %p58
        $region18: #{tpu_custom_call.1} parent=15 // pred_check_branch
          %231 = sbr.rel (%p229) target = $region20
        $region19: #{tpu_custom_call.1} parent=15 // pred_region
          %s232 = smul.u32 16, %s24
          %p233 = scmp.lt.s32.totalorder %s22, 1
          %s234 = scalar_select %p233, %s22, 1
          %p235 = scmp.lt.s32.totalorder %s23, 1
          %s236 = scalar_select %p235, %s23, 1
          %p237 = scmp.lt.s32.totalorder %s232, 15
          %s238 = scalar_select %p237, %s232, 15
          %s239 = smul.addr %s236, 16
          %s240 = sadd.s32 %s238, %s239
          %s241 = smul.addr %s234, 32
          %s242 = sadd.s32 %s240, %s241
          %s243 = smul.addr %s242, 8
          %s244 = scalar_lea.vmem %s0, %s243
          %s245 = smul.u32 16, %s24
        $region20: #{tpu_custom_call.1} parent=15 // pred_fallthru
          _
        // Predicated region
        $region21: #{tpu_custom_call.1} parent=15 // pred_check
          %p246 = pneg %p86
        $region22: #{tpu_custom_call.1} parent=15 // pred_check_branch
          %248 = sbr.rel (%p246) target = $region24
        $region23: #{tpu_custom_call.1} parent=15 // pred_region
          %p249 = scmp.lt.s32.totalorder %s22, 1
          %s250 = scalar_select %p249, %s22, 1
          %p251 = scmp.lt.s32.totalorder %s23, 1
          %s252 = scalar_select %p251, %s23, 1
          %s253 = smul.addr %s252, 16
          %s254 = smul.addr %s250, 32
          %s255 = sadd.s32 %s253, %s254
          %s256 = smul.addr %s255, 8
          %s257 = scalar_lea.vmem %s1, %s256
        $region24: #{tpu_custom_call.1} parent=15 // pred_fallthru
          _
        // Predicated region
        $region25: #{tpu_custom_call.1} parent=15 // pred_check
          %p258 = pneg %p114
        $region26: #{tpu_custom_call.1} parent=15 // pred_check_branch
          %260 = sbr.rel (%p258) target = $region28
        $region27: #{tpu_custom_call.1} parent=15 // pred_region
          %p261 = scmp.lt.s32.totalorder %s22, 1
          %s262 = scalar_select %p261, %s22, 1
          %p263 = scmp.lt.s32.totalorder %s23, 1
          %s264 = scalar_select %p263, %s23, 1
          %s265 = smul.addr %s264, 16
          %s266 = smul.addr %s262, 32
          %s267 = sadd.s32 %s265, %s266
          %s268 = smul.addr %s267, 8
          %s269 = scalar_lea.vmem %s2, %s268
        $region28: #{tpu_custom_call.1} parent=15 // pred_fallthru
          _
        // Predicated region
        $region29: #{tpu_custom_call.1} parent=15 // pred_check
          %p270 = pneg %p144
        $region30: #{tpu_custom_call.1} parent=15 // pred_check_branch
          %272 = sbr.rel (%p270) target = $region32
        $region31: #{tpu_custom_call.1} parent=15 // pred_region
          %s273 = smul.u32 4, %s24
          %p274 = scmp.lt.s32.totalorder %s22, 1
          %s275 = scalar_select %p274, %s22, 1
          %p276 = scmp.lt.s32.totalorder %s23, 1
          %s277 = scalar_select %p276, %s23, 1
          %p278 = scmp.lt.s32.totalorder %s273, 3
          %s279 = scalar_select %p278, %s273, 3
          %s280 = smul.addr %s277, 4
          %s281 = sadd.s32 %s279, %s280
          %s282 = smul.addr %s275, 8
          %s283 = sadd.s32 %s281, %s282
          %s284 = smul.addr %s283, 8
          %s285 = scalar_lea.vmem %s3, %s284
          %s286 = smul.u32 4, %s24
        $region32: #{tpu_custom_call.1} parent=15 // pred_fallthru
          _
      $region16: #{tpu_custom_call.1} parent=5 // pred_fallthru
        _
      %p287 = scmp.le.s32.totalorder 1, %s15
      %p288 = scmp.lt.s32.totalorder %s15, 5
      %p289 = pnand %p287, %p288
      %p290 = pneg %p289
      // Predicated region
      $region33: #{tpu_custom_call.1} parent=5 // pred_check
        _
      $region34: #{tpu_custom_call.1} parent=5 // pred_check_branch
        %292 = sbr.rel (%p289) target = $region36
      $region35: #{tpu_custom_call.1} parent=5 // pred_region
        %s293 = ssub.s32 %s15, 1
        %s294 = smul.u32 16, %s27
        %p295 = scmp.lt.s32.totalorder %s25, 1
        %s296 = scalar_select %p295, %s25, 1
        %p297 = scmp.lt.s32.totalorder %s26, 1
        %s298 = scalar_select %p297, %s26, 1
        %p299 = scmp.lt.s32.totalorder %s294, 15
        %s300 = scalar_select %p299, %s294, 15
        %s301 = smul.addr %s298, 16
        %s302 = sadd.s32 %s300, %s301
        %s303 = smul.addr %s296, 32
        %s304 = sadd.s32 %s302, %s303
        %s305 = smul.addr %s304, 8
        %s306 = scalar_lea.vmem %s0, %s305
        %p307 = pneg %p64
        %p308 = pneg %p61
        %p309 = scmp.lt.s32.totalorder %s25, 1
        %s310 = scalar_select %p309, %s25, 1
        %p311 = scmp.lt.s32.totalorder %s26, 1
        %s312 = scalar_select %p311, %s26, 1
        %s313 = smul.addr %s312, 16
        %s314 = smul.addr %s310, 32
        %s315 = sadd.s32 %s313, %s314
        %s316 = smul.addr %s315, 8
        %s317 = scalar_lea.vmem %s1, %s316
        %p318 = pneg %p92
        %p319 = pneg %p89
        %p320 = scmp.lt.s32.totalorder %s25, 1
        %s321 = scalar_select %p320, %s25, 1
        %p322 = scmp.lt.s32.totalorder %s26, 1
        %s323 = scalar_select %p322, %s26, 1
        %s324 = smul.addr %s323, 16
        %s325 = smul.addr %s321, 32
        %s326 = sadd.s32 %s324, %s325
        %s327 = smul.addr %s326, 8
        %s328 = scalar_lea.vmem %s2, %s327
        %p329 = pneg %p120
        %p330 = pneg %p117
        %s331 = smul.u32 4, %s27
        %p332 = scmp.lt.s32.totalorder %s25, 1
        %s333 = scalar_select %p332, %s25, 1
        %p334 = scmp.lt.s32.totalorder %s26, 1
        %s335 = scalar_select %p334, %s26, 1
        %p336 = scmp.lt.s32.totalorder %s331, 3
        %s337 = scalar_select %p336, %s331, 3
        %s338 = smul.addr %s335, 4
        %s339 = sadd.s32 %s337, %s338
        %s340 = smul.addr %s333, 8
        %s341 = sadd.s32 %s339, %s340
        %s342 = smul.addr %s341, 8
        %s343 = scalar_lea.vmem %s3, %s342
        %p344 = pneg %p150
        %p345 = pneg %p147
        %p346 = pneg %p180
        %p347 = pneg %p177
        %s348 = smul.u32 16, %s27
        %p349 = scmp.lt.s32.totalorder %s25, 1
        %s350 = scalar_select %p349, %s25, 1
        %p351 = scmp.lt.s32.totalorder %s26, 1
        %s352 = scalar_select %p351, %s26, 1
        %p353 = scmp.lt.s32.totalorder %s348, 15
        %s354 = scalar_select %p353, %s348, 15
        %s355 = smul.addr %s352, 16
        %s356 = sadd.s32 %s354, %s355
        %s357 = smul.addr %s350, 32
        %s358 = sadd.s32 %s356, %s357
        %s359 = smul.addr %s358, 8
        %s360 = scalar_lea.vmem %s4, %s359
        %p361 = pneg %p210
        %p362 = pneg %p207
        %s363 = sand.u32 %s197, 1
        %s364 = scalar_lea.sflag [#allocation3], %s363
        %s365 = sand.u32 %s197, 1
        %s366 = smul.addr %s365, 128
        %s367 = scalar_lea.vmem [#allocation2], %s366
        %s368 = smul.u32 16, %s27
        %p369 = scmp.lt.s32.totalorder %s25, 1
        %s370 = scalar_select %p369, %s25, 1
        %p371 = scmp.lt.s32.totalorder %s26, 1
        %s372 = scalar_select %p371, %s26, 1
        %p373 = scmp.lt.s32.totalorder %s368, 15
        %s374 = scalar_select %p373, %s368, 15
        %s375 = smul.addr %s372, 16
        %s376 = sadd.s32 %s374, %s375
        %s377 = smul.addr %s370, 32
        %s378 = sadd.s32 %s376, %s377
        %s379 = smul.addr %s378, 8
        %s380 = scalar_lea.vmem %s0, %s379
        %s381 = smul.u32 16, %s27
        %p382 = scmp.lt.s32.totalorder %s25, 1
        %s383 = scalar_select %p382, %s25, 1
        %p384 = scmp.lt.s32.totalorder %s26, 1
        %s385 = scalar_select %p384, %s26, 1
        %s386 = smul.addr %s385, 16
        %s387 = smul.addr %s383, 32
        %s388 = sadd.s32 %s386, %s387
        %s389 = smul.addr %s388, 8
        %s390 = scalar_lea.vmem %s1, %s389
        %p391 = scmp.lt.s32.totalorder %s25, 1
        %s392 = scalar_select %p391, %s25, 1
        %p393 = scmp.lt.s32.totalorder %s26, 1
        %s394 = scalar_select %p393, %s26, 1
        %s395 = smul.addr %s394, 16
        %s396 = smul.addr %s392, 32
        %s397 = sadd.s32 %s395, %s396
        %s398 = smul.addr %s397, 8
        %s399 = scalar_lea.vmem %s2, %s398
        %s400 = smul.u32 4, %s27
        %p401 = scmp.lt.s32.totalorder %s25, 1
        %s402 = scalar_select %p401, %s25, 1
        %p403 = scmp.lt.s32.totalorder %s26, 1
        %s404 = scalar_select %p403, %s26, 1
        %p405 = scmp.lt.s32.totalorder %s400, 3
        %s406 = scalar_select %p405, %s400, 3
        %s407 = smul.addr %s404, 4
        %s408 = sadd.s32 %s406, %s407
        %s409 = smul.addr %s402, 8
        %s410 = sadd.s32 %s408, %s409
        %s411 = smul.addr %s410, 8
        %s412 = scalar_lea.vmem %s3, %s411
        %s413 = smul.u32 4, %s27
        %s414 = smul.u32 16, %s27
        %p415 = scmp.lt.s32.totalorder %s25, 1
        %s416 = scalar_select %p415, %s25, 1
        %p417 = scmp.lt.s32.totalorder %s26, 1
        %s418 = scalar_select %p417, %s26, 1
        %p419 = scmp.lt.s32.totalorder %s414, 15
        %s420 = scalar_select %p419, %s414, 15
        %s421 = smul.addr %s418, 16
        %s422 = sadd.s32 %s420, %s421
        %s423 = smul.addr %s416, 32
        %s424 = sadd.s32 %s422, %s423
        %s425 = smul.addr %s424, 8
        %s426 = scalar_lea.vmem %s4, %s425
        %s427 = smul.u32 16, %s27
        %s428 = smul.u32 16, %s27
        %v431 = vld [vmem:[%s380] sm:$0xff]
        %v432 = vld [vmem:[%s380 + $0x8] sm:$0xff]
        %v433 = vld [vmem:[%s380 + $0x10] sm:$0xff]
        %v434 = vld [vmem:[%s380 + $0x18] sm:$0xff]
        %v435 = vld [vmem:[%s380 + $0x20] sm:$0xff]
        %v436 = vld [vmem:[%s380 + $0x28] sm:$0xff]
        %v437 = vld [vmem:[%s380 + $0x30] sm:$0xff]
        %v438 = vld [vmem:[%s380 + $0x38] sm:$0xff]
        %v439 = vld [vmem:[%s380 + $0x40] sm:$0xff]
        %v440 = vld [vmem:[%s380 + $0x48] sm:$0xff]
        %v441 = vld [vmem:[%s380 + $0x50] sm:$0xff]
        %v442 = vld [vmem:[%s380 + $0x58] sm:$0xff]
        %v443 = vld [vmem:[%s380 + $0x60] sm:$0xff]
        %v444 = vld [vmem:[%s380 + $0x68] sm:$0xff]
        %v445 = vld [vmem:[%s380 + $0x70] sm:$0xff]
        %v446 = vld [vmem:[%s380 + $0x78] sm:$0xff]
        %v447 = vld [vmem:[%s390] sm:$0xff]
        %v448 = vld [vmem:[%s390 + $0x8] sm:$0xff]
        %v449 = vld [vmem:[%s390 + $0x10] sm:$0xff]
        %v450 = vld [vmem:[%s390 + $0x18] sm:$0xff]
        %v451 = vld [vmem:[%s390 + $0x20] sm:$0xff]
        %v452 = vld [vmem:[%s390 + $0x28] sm:$0xff]
        %v453 = vld [vmem:[%s390 + $0x30] sm:$0xff]
        %v454 = vld [vmem:[%s390 + $0x38] sm:$0xff]
        %v455 = vld [vmem:[%s390 + $0x40] sm:$0xff]
        %v456 = vld [vmem:[%s390 + $0x48] sm:$0xff]
        %v457 = vld [vmem:[%s390 + $0x50] sm:$0xff]
        %v458 = vld [vmem:[%s390 + $0x58] sm:$0xff]
        %v459 = vld [vmem:[%s390 + $0x60] sm:$0xff]
        %v460 = vld [vmem:[%s390 + $0x68] sm:$0xff]
        %v461 = vld [vmem:[%s390 + $0x70] sm:$0xff]
        %v462 = vld [vmem:[%s390 + $0x78] sm:$0xff]
        %v463 = vld [vmem:[%s399] sm:$0xff]
        %v464 = vld [vmem:[%s399 + $0x8] sm:$0xff]
        %v465 = vld [vmem:[%s399 + $0x10] sm:$0xff]
        %v466 = vld [vmem:[%s399 + $0x18] sm:$0xff]
        %v467 = vld [vmem:[%s399 + $0x20] sm:$0xff]
        %v468 = vld [vmem:[%s399 + $0x28] sm:$0xff]
        %v469 = vld [vmem:[%s399 + $0x30] sm:$0xff]
        %v470 = vld [vmem:[%s399 + $0x38] sm:$0xff]
        %v471 = vld [vmem:[%s399 + $0x40] sm:$0xff]
        %v472 = vld [vmem:[%s399 + $0x48] sm:$0xff]
        %v473 = vld [vmem:[%s399 + $0x50] sm:$0xff]
        %v474 = vld [vmem:[%s399 + $0x58] sm:$0xff]
        %v475 = vld [vmem:[%s399 + $0x60] sm:$0xff]
        %v476 = vld [vmem:[%s399 + $0x68] sm:$0xff]
        %v477 = vld [vmem:[%s399 + $0x70] sm:$0xff]
        %v478 = vld [vmem:[%s399 + $0x78] sm:$0xff]
        %v479 = vld [vmem:[%s412] sm:$0xff]
        %v480 = vld [vmem:[%s412 + $0x8] sm:$0xff]
        %v481 = vld [vmem:[%s412 + $0x10] sm:$0xff]
        %v482 = vld [vmem:[%s412 + $0x18] sm:$0xff]
        %v483 = vmul.f32 %v431, 0.125
        %v484 = vmul.f32 %v432, 0.125
        %v485 = vmul.f32 %v433, 0.125
        %v486 = vmul.f32 %v434, 0.125
        %v487 = vmul.f32 %v435, 0.125
        %v488 = vmul.f32 %v436, 0.125
        %v489 = vmul.f32 %v437, 0.125
        %v490 = vmul.f32 %v438, 0.125
        %v491 = vmul.f32 %v439, 0.125
        %v492 = vmul.f32 %v440, 0.125
        %v493 = vmul.f32 %v441, 0.125
        %v494 = vmul.f32 %v442, 0.125
        %v495 = vmul.f32 %v443, 0.125
        %v496 = vmul.f32 %v444, 0.125
        %v497 = vmul.f32 %v445, 0.125
        %v498 = vmul.f32 %v446, 0.125
        %vm499 = vcmask 523264
        %v501 = vsel %vm499, %v483, 0
        %v504 = vsel %vm499, %v484, 0
        %v507 = vsel %vm499, %v485, 0
        %v510 = vsel %vm499, %v486, 0
        %v513 = vsel %vm499, %v487, 0
        %v516 = vsel %vm499, %v488, 0
        %v519 = vsel %vm499, %v489, 0
        %v522 = vsel %vm499, %v490, 0
        %v525 = vsel %vm499, %v491, 0
        %v528 = vsel %vm499, %v492, 0
        %v531 = vsel %vm499, %v493, 0
        %v534 = vsel %vm499, %v494, 0
        %v537 = vsel %vm499, %v495, 0
        %v540 = vsel %vm499, %v496, 0
        %v543 = vsel %vm499, %v497, 0
        %v546 = vsel %vm499, %v498, 0
        %v549 = vsel %vm499, %v447, 0
        %v552 = vsel %vm499, %v448, 0
        %v555 = vsel %vm499, %v449, 0
        %v558 = vsel %vm499, %v450, 0
        %v561 = vsel %vm499, %v451, 0
        %v564 = vsel %vm499, %v452, 0
        %v567 = vsel %vm499, %v453, 0
        %v570 = vsel %vm499, %v454, 0
        %v573 = vsel %vm499, %v455, 0
        %v576 = vsel %vm499, %v456, 0
        %v579 = vsel %vm499, %v457, 0
        %v582 = vsel %vm499, %v458, 0
        %v585 = vsel %vm499, %v459, 0
        %v588 = vsel %vm499, %v460, 0
        %v591 = vsel %vm499, %v461, 0
        %v594 = vsel %vm499, %v462, 0
        %596 = vmatprep.subr.mxu0 0.0
        %597 = vmatpush1.xpose.msra.mxu0 %v549
        %598 = vmatprep.subr.mxu0 0.0
        %599 = vmatpush1.xpose.msra.mxu0 %v552
        %600 = vmatprep.subr.mxu0 0.0
        %601 = vmatpush1.xpose.msra.mxu0 %v555
        %602 = vmatprep.subr.mxu0 0.0
        %603 = vmatpush1.xpose.msra.mxu0 %v558
        %604 = vmatprep.subr.mxu0 0.0
        %605 = vmatpush1.xpose.msra.mxu0 %v561
        %606 = vmatprep.subr.mxu0 0.0
        %607 = vmatpush1.xpose.msra.mxu0 %v564
        %608 = vmatprep.subr.mxu0 0.0
        %609 = vmatpush1.xpose.msra.mxu0 %v567
        %610 = vmatprep.subr.mxu0 0.0
        %611 = vmatpush1.xpose.msra.mxu0 %v570
        %612 = vmatprep.subr.mxu0 0.0
        %613 = vmatpush1.xpose.msra.mxu0 %v573
        %614 = vmatprep.subr.mxu0 0.0
        %615 = vmatpush1.xpose.msra.mxu0 %v576
        %616 = vmatprep.subr.mxu0 0.0
        %617 = vmatpush1.xpose.msra.mxu0 %v579
        %618 = vmatprep.subr.mxu0 0.0
        %619 = vmatpush1.xpose.msra.mxu0 %v582
        %620 = vmatprep.subr.mxu0 0.0
        %621 = vmatpush1.xpose.msra.mxu0 %v585
        %622 = vmatprep.subr.mxu0 0.0
        %623 = vmatpush1.xpose.msra.mxu0 %v588
        %624 = vmatprep.subr.mxu0 0.0
        %625 = vmatpush1.xpose.msra.mxu0 %v591
        %626 = vmatprep.subr.mxu0 0.0
        %627 = vmatpush1.xpose.msra.mxu0 %v594
        %628 = vmatprep.subr.mxu0 0.0
        %629 = vmatpush1.xpose.msra.mxu0 0.0
        %630 = vmatprep.subr.mxu0 0.0
        %631 = vmatpush1.xpose.msra.mxu0 0.0
        %632 = vmatprep.subr.mxu0 0.0
        %633 = vmatpush1.xpose.msra.mxu0 0.0
        %634 = vmatprep.subr.mxu0 0.0
        %635 = vmatpush1.xpose.msra.mxu0 0.0
        %636 = vmatprep.subr.mxu0 0.0
        %637 = vmatpush1.xpose.msra.mxu0 0.0
        %638 = vmatprep.subr.mxu0 0.0
        %639 = vmatpush1.xpose.msra.mxu0 0.0
        %640 = vmatprep.subr.mxu0 0.0
        %641 = vmatpush1.xpose.msra.mxu0 0.0
        %642 = vmatprep.subr.mxu0 0.0
        %643 = vmatpush1.xpose.msra.mxu0 0.0
        %644 = vmatprep.subr.mxu0 0.0
        %645 = vmatpush1.xpose.msra.mxu0 0.0
        %646 = vmatprep.subr.mxu0 0.0
        %647 = vmatpush1.xpose.msra.mxu0 0.0
        %648 = vmatprep.subr.mxu0 0.0
        %649 = vmatpush1.xpose.msra.mxu0 0.0
        %650 = vmatprep.subr.mxu0 0.0
        %651 = vmatpush1.xpose.msra.mxu0 0.0
        %652 = vmatprep.subr.mxu0 0.0
        %653 = vmatpush1.xpose.msra.mxu0 0.0
        %654 = vmatprep.subr.mxu0 0.0
        %655 = vmatpush1.xpose.msra.mxu0 0.0
        %656 = vmatprep.subr.mxu0 0.0
        %657 = vmatpush1.xpose.msra.mxu0 0.0
        %658 = vmatprep.subr.mxu0 0.0
        %659 = vmatpush1.xpose.msra.mxu0 0.0
        %660 = vmatprep.mubr.f32.mxu0 0.0
        %661 = vmatmul.mubr.f32.gmra.mrb[0].mxu0 %v501
        %v662 = vpop.f32.mrb[0].mxu0
        %v663 = vadd.f32 0.0, %v662
        %v664 = vpop.f32.mrb[0].mxu0
        %665 = vmatprep.mubr.f32.mxu0 0.0
        %666 = vmatmul.mubr.f32.gmra.mrb[0].mxu0 %v504
        %v667 = vpop.f32.mrb[0].mxu0
        %v668 = vadd.f32 0.0, %v667
        %v669 = vpop.f32.mrb[0].mxu0
        %670 = vmatprep.mubr.f32.mxu0 0.0
        %671 = vmatmul.mubr.f32.gmra.mrb[0].mxu0 %v507
        %v672 = vpop.f32.mrb[0].mxu0
        %v673 = vadd.f32 0.0, %v672
        %v674 = vpop.f32.mrb[0].mxu0
        %675 = vmatprep.mubr.f32.mxu0 0.0
        %676 = vmatmul.mubr.f32.gmra.mrb[0].mxu0 %v510
        %v677 = vpop.f32.mrb[0].mxu0
        %v678 = vadd.f32 0.0, %v677
        %v679 = vpop.f32.mrb[0].mxu0
        %680 = vmatprep.mubr.f32.mxu0 0.0
        %681 = vmatmul.mubr.f32.gmra.mrb[0].mxu0 %v513
        %v682 = vpop.f32.mrb[0].mxu0
        %v683 = vadd.f32 0.0, %v682
        %v684 = vpop.f32.mrb[0].mxu0
        %685 = vmatprep.mubr.f32.mxu0 0.0
        %686 = vmatmul.mubr.f32.gmra.mrb[0].mxu0 %v516
        %v687 = vpop.f32.mrb[0].mxu0
        %v688 = vadd.f32 0.0, %v687
        %v689 = vpop.f32.mrb[0].mxu0
        %690 = vmatprep.mubr.f32.mxu0 0.0
        %691 = vmatmul.mubr.f32.gmra.mrb[0].mxu0 %v519
        %v692 = vpop.f32.mrb[0].mxu0
        %v693 = vadd.f32 0.0, %v692
        %v694 = vpop.f32.mrb[0].mxu0
        %695 = vmatprep.mubr.f32.mxu0 0.0
        %696 = vmatmul.mubr.f32.gmra.mrb[0].mxu0 %v522
        %v697 = vpop.f32.mrb[0].mxu0
        %v698 = vadd.f32 0.0, %v697
        %v699 = vpop.f32.mrb[0].mxu0
        %700 = vmatprep.mubr.f32.mxu0 0.0
        %701 = vmatmul.mubr.f32.gmra.mrb[0].mxu0 %v525
        %v702 = vpop.f32.mrb[0].mxu0
        %v703 = vadd.f32 0.0, %v702
        %v704 = vpop.f32.mrb[0].mxu0
        %705 = vmatprep.mubr.f32.mxu0 0.0
        %706 = vmatmul.mubr.f32.gmra.mrb[0].mxu0 %v528
        %v707 = vpop.f32.mrb[0].mxu0
        %v708 = vadd.f32 0.0, %v707
        %v709 = vpop.f32.mrb[0].mxu0
        %710 = vmatprep.mubr.f32.mxu0 0.0
        %711 = vmatmul.mubr.f32.gmra.mrb[0].mxu0 %v531
        %v712 = vpop.f32.mrb[0].mxu0
        %v713 = vadd.f32 0.0, %v712
        %v714 = vpop.f32.mrb[0].mxu0
        %715 = vmatprep.mubr.f32.mxu0 0.0
        %716 = vmatmul.mubr.f32.gmra.mrb[0].mxu0 %v534
        %v717 = vpop.f32.mrb[0].mxu0
        %v718 = vadd.f32 0.0, %v717
        %v719 = vpop.f32.mrb[0].mxu0
        %720 = vmatprep.mubr.f32.mxu0 0.0
        %721 = vmatmul.mubr.f32.gmra.mrb[0].mxu0 %v537
        %v722 = vpop.f32.mrb[0].mxu0
        %v723 = vadd.f32 0.0, %v722
        %v724 = vpop.f32.mrb[0].mxu0
        %725 = vmatprep.mubr.f32.mxu0 0.0
        %726 = vmatmul.mubr.f32.gmra.mrb[0].mxu0 %v540
        %v727 = vpop.f32.mrb[0].mxu0
        %v728 = vadd.f32 0.0, %v727
        %v729 = vpop.f32.mrb[0].mxu0
        %730 = vmatprep.mubr.f32.mxu0 0.0
        %731 = vmatmul.mubr.f32.gmra.mrb[0].mxu0 %v543
        %v732 = vpop.f32.mrb[0].mxu0
        %v733 = vadd.f32 0.0, %v732
        %v734 = vpop.f32.mrb[0].mxu0
        %735 = vmatprep.mubr.f32.mxu0 0.0
        %736 = vmatmul.mubr.f32.gmra.mrb[0].mxu0 %v546
        %v737 = vpop.f32.mrb[0].mxu0
        %v738 = vadd.f32 0.0, %v737
        %v739 = vpop.f32.mrb[0].mxu0
        %740 = vdwg.mxu0
        %vm741 = vnez %v479
        %vm742 = vnez %v480
        %vm743 = vnez %v481
        %vm744 = vnez %v482
        %v745 = vsel %vm741, 16843009, 0
        %v746 = vsel %vm742, 16843009, 0
        %v747 = vsel %vm743, 16843009, 0
        %v748 = vsel %vm744, 16843009, 0
        %v749 = vunpack.c.0.s8 %v745
        %v750 = vunpack.c.1.s8 %v745
        %v751 = vunpack.c.2.s8 %v745
        %v752 = vunpack.c.3.s8 %v745
        %v753 = vunpack.c.0.s8 %v746
        %v754 = vunpack.c.1.s8 %v746
        %v755 = vunpack.c.2.s8 %v746
        %v756 = vunpack.c.3.s8 %v746
        %v757 = vunpack.c.0.s8 %v747
        %v758 = vunpack.c.1.s8 %v747
        %v759 = vunpack.c.2.s8 %v747
        %v760 = vunpack.c.3.s8 %v747
        %v761 = vunpack.c.0.s8 %v748
        %v762 = vunpack.c.1.s8 %v748
        %v763 = vunpack.c.2.s8 %v748
        %v764 = vunpack.c.3.s8 %v748
        %v765 = vpack.c.b16 %v749, %v749
        %v766 = vpack.c.b8 %v765, %v765
        %v767 = vpack.c.b16 %v750, %v750
        %v768 = vpack.c.b8 %v767, %v767
        %v769 = vpack.c.b16 %v751, %v751
        %v770 = vpack.c.b8 %v769, %v769
        %v771 = vpack.c.b16 %v752, %v752
        %v772 = vpack.c.b8 %v771, %v771
        %v773 = vpack.c.b16 %v753, %v753
        %v774 = vpack.c.b8 %v773, %v773
        %v775 = vpack.c.b16 %v754, %v754
        %v776 = vpack.c.b8 %v775, %v775
        %v777 = vpack.c.b16 %v755, %v755
        %v778 = vpack.c.b8 %v777, %v777
        %v779 = vpack.c.b16 %v756, %v756
        %v780 = vpack.c.b8 %v779, %v779
        %v781 = vpack.c.b16 %v757, %v757
        %v782 = vpack.c.b8 %v781, %v781
        %v783 = vpack.c.b16 %v758, %v758
        %v784 = vpack.c.b8 %v783, %v783
        %v785 = vpack.c.b16 %v759, %v759
        %v786 = vpack.c.b8 %v785, %v785
        %v787 = vpack.c.b16 %v760, %v760
        %v788 = vpack.c.b8 %v787, %v787
        %v789 = vpack.c.b16 %v761, %v761
        %v790 = vpack.c.b8 %v789, %v789
        %v791 = vpack.c.b16 %v762, %v762
        %v792 = vpack.c.b8 %v791, %v791
        %v793 = vpack.c.b16 %v763, %v763
        %v794 = vpack.c.b8 %v793, %v793
        %v795 = vpack.c.b16 %v764, %v764
        %v796 = vpack.c.b8 %v795, %v795
        %vm797 = vnez %v766
        %vm798 = vnez %v768
        %vm799 = vnez %v770
        %vm800 = vnez %v772
        %vm801 = vnez %v774
        %vm802 = vnez %v776
        %vm803 = vnez %v778
        %vm804 = vnez %v780
        %vm805 = vnez %v782
        %vm806 = vnez %v784
        %vm807 = vnez %v786
        %vm808 = vnez %v788
        %vm809 = vnez %v790
        %vm810 = vnez %v792
        %vm811 = vnez %v794
        %vm812 = vnez %v796
        %v813 = vsel %vm797, 16843009, 0
        %v814 = vsel %vm798, 16843009, 0
        %v815 = vsel %vm799, 16843009, 0
        %v816 = vsel %vm800, 16843009, 0
        %v817 = vsel %vm801, 16843009, 0
        %v818 = vsel %vm802, 16843009, 0
        %v819 = vsel %vm803, 16843009, 0
        %v820 = vsel %vm804, 16843009, 0
        %v821 = vsel %vm805, 16843009, 0
        %v822 = vsel %vm806, 16843009, 0
        %v823 = vsel %vm807, 16843009, 0
        %v824 = vsel %vm808, 16843009, 0
        %v825 = vsel %vm809, 16843009, 0
        %v826 = vsel %vm810, 16843009, 0
        %v827 = vsel %vm811, 16843009, 0
        %v828 = vsel %vm812, 16843009, 0
        %v829 = vunpack.c.0.s8 %v813
        %v830 = vunpack.c.0.s8 %v814
        %v831 = vunpack.c.0.s8 %v815
        %v832 = vunpack.c.0.s8 %v816
        %v833 = vunpack.c.0.s8 %v817
        %v834 = vunpack.c.0.s8 %v818
        %v835 = vunpack.c.0.s8 %v819
        %v836 = vunpack.c.0.s8 %v820
        %v837 = vunpack.c.0.s8 %v821
        %v838 = vunpack.c.0.s8 %v822
        %v839 = vunpack.c.0.s8 %v823
        %v840 = vunpack.c.0.s8 %v824
        %v841 = vunpack.c.0.s8 %v825
        %v842 = vunpack.c.0.s8 %v826
        %v843 = vunpack.c.0.s8 %v827
        %v844 = vunpack.c.0.s8 %v828
        %vm845 = vcmp.ne.s32.totalorder %v829, 0
        %vm846 = vcmp.ne.s32.totalorder %v830, 0
        %vm847 = vcmp.ne.s32.totalorder %v831, 0
        %vm848 = vcmp.ne.s32.totalorder %v832, 0
        %vm849 = vcmp.ne.s32.totalorder %v833, 0
        %vm850 = vcmp.ne.s32.totalorder %v834, 0
        %vm851 = vcmp.ne.s32.totalorder %v835, 0
        %vm852 = vcmp.ne.s32.totalorder %v836, 0
        %vm853 = vcmp.ne.s32.totalorder %v837, 0
        %vm854 = vcmp.ne.s32.totalorder %v838, 0
        %vm855 = vcmp.ne.s32.totalorder %v839, 0
        %vm856 = vcmp.ne.s32.totalorder %v840, 0
        %vm857 = vcmp.ne.s32.totalorder %v841, 0
        %vm858 = vcmp.ne.s32.totalorder %v842, 0
        %vm859 = vcmp.ne.s32.totalorder %v843, 0
        %vm860 = vcmp.ne.s32.totalorder %v844, 0
        %v861 = vsel %vm845, -1e+09, %v663
        %v862 = vsel %vm846, -1e+09, %v668
        %v863 = vsel %vm847, -1e+09, %v673
        %v864 = vsel %vm848, -1e+09, %v678
        %v865 = vsel %vm849, -1e+09, %v683
        %v866 = vsel %vm850, -1e+09, %v688
        %v867 = vsel %vm851, -1e+09, %v693
        %v868 = vsel %vm852, -1e+09, %v698
        %v869 = vsel %vm853, -1e+09, %v703
        %v870 = vsel %vm854, -1e+09, %v708
        %v871 = vsel %vm855, -1e+09, %v713
        %v872 = vsel %vm856, -1e+09, %v718
        %v873 = vsel %vm857, -1e+09, %v723
        %v874 = vsel %vm858, -1e+09, %v728
        %v875 = vsel %vm859, -1e+09, %v733
        %v876 = vsel %vm860, -1e+09, %v738
        %877 = vmax.xlane.f32.xlu0 %v861
        %v878 = vpop.xlane.xlu0 %877
        %879 = vmax.xlane.f32.xlu0 %v862
        %v880 = vpop.xlane.xlu0 %879
        %881 = vmax.xlane.f32.xlu0 %v863
        %v882 = vpop.xlane.xlu0 %881
        %883 = vmax.xlane.f32.xlu0 %v864
        %v884 = vpop.xlane.xlu0 %883
        %885 = vmax.xlane.f32.xlu0 %v865
        %v886 = vpop.xlane.xlu0 %885
        %887 = vmax.xlane.f32.xlu0 %v866
        %v888 = vpop.xlane.xlu0 %887
        %889 = vmax.xlane.f32.xlu0 %v867
        %v890 = vpop.xlane.xlu0 %889
        %891 = vmax.xlane.f32.xlu0 %v868
        %v892 = vpop.xlane.xlu0 %891
        %893 = vmax.xlane.f32.xlu0 %v869
        %v894 = vpop.xlane.xlu0 %893
        %895 = vmax.xlane.f32.xlu0 %v870
        %v896 = vpop.xlane.xlu0 %895
        %897 = vmax.xlane.f32.xlu0 %v871
        %v898 = vpop.xlane.xlu0 %897
        %899 = vmax.xlane.f32.xlu0 %v872
        %v900 = vpop.xlane.xlu0 %899
        %901 = vmax.xlane.f32.xlu0 %v873
        %v902 = vpop.xlane.xlu0 %901
        %903 = vmax.xlane.f32.xlu0 %v874
        %v904 = vpop.xlane.xlu0 %903
        %905 = vmax.xlane.f32.xlu0 %v875
        %v906 = vpop.xlane.xlu0 %905
        %907 = vmax.xlane.f32.xlu0 %v876
        %v908 = vpop.xlane.xlu0 %907
        %v909 = vsub.f32 %v861, %v878
        %v910 = vsub.f32 %v862, %v880
        %v911 = vsub.f32 %v863, %v882
        %v912 = vsub.f32 %v864, %v884
        %v913 = vsub.f32 %v865, %v886
        %v914 = vsub.f32 %v866, %v888
        %v915 = vsub.f32 %v867, %v890
        %v916 = vsub.f32 %v868, %v892
        %v917 = vsub.f32 %v869, %v894
        %v918 = vsub.f32 %v870, %v896
        %v919 = vsub.f32 %v871, %v898
        %v920 = vsub.f32 %v872, %v900
        %v921 = vsub.f32 %v873, %v902
        %v922 = vsub.f32 %v874, %v904
        %v923 = vsub.f32 %v875, %v906
        %v924 = vsub.f32 %v876, %v908
        %v925 = vmul.f32 %v909, 1.442695
        %v926 = vpow.pop %v925
        %v927 = vmul.f32 %v910, 1.442695
        %v928 = vpow.pop %v927
        %v929 = vmul.f32 %v911, 1.442695
        %v930 = vpow.pop %v929
        %v931 = vmul.f32 %v912, 1.442695
        %v932 = vpow.pop %v931
        %v933 = vmul.f32 %v913, 1.442695
        %v934 = vpow.pop %v933
        %v935 = vmul.f32 %v914, 1.442695
        %v936 = vpow.pop %v935
        %v937 = vmul.f32 %v915, 1.442695
        %v938 = vpow.pop %v937
        %v939 = vmul.f32 %v916, 1.442695
        %v940 = vpow.pop %v939
        %v941 = vmul.f32 %v917, 1.442695
        %v942 = vpow.pop %v941
        %v943 = vmul.f32 %v918, 1.442695
        %v944 = vpow.pop %v943
        %v945 = vmul.f32 %v919, 1.442695
        %v946 = vpow.pop %v945
        %v947 = vmul.f32 %v920, 1.442695
        %v948 = vpow.pop %v947
        %v949 = vmul.f32 %v921, 1.442695
        %v950 = vpow.pop %v949
        %v951 = vmul.f32 %v922, 1.442695
        %v952 = vpow.pop %v951
        %v953 = vmul.f32 %v923, 1.442695
        %v954 = vpow.pop %v953
        %v955 = vmul.f32 %v924, 1.442695
        %v956 = vpow.pop %v955
        %957 = vadd.xlane.f32.xlu0 %v926
        %v958 = vpop.xlane.xlu0 %957
        %959 = vadd.xlane.f32.xlu0 %v928
        %v960 = vpop.xlane.xlu0 %959
        %961 = vadd.xlane.f32.xlu0 %v930
        %v962 = vpop.xlane.xlu0 %961
        %963 = vadd.xlane.f32.xlu0 %v932
        %v964 = vpop.xlane.xlu0 %963
        %965 = vadd.xlane.f32.xlu0 %v934
        %v966 = vpop.xlane.xlu0 %965
        %967 = vadd.xlane.f32.xlu0 %v936
        %v968 = vpop.xlane.xlu0 %967
        %969 = vadd.xlane.f32.xlu0 %v938
        %v970 = vpop.xlane.xlu0 %969
        %971 = vadd.xlane.f32.xlu0 %v940
        %v972 = vpop.xlane.xlu0 %971
        %973 = vadd.xlane.f32.xlu0 %v942
        %v974 = vpop.xlane.xlu0 %973
        %975 = vadd.xlane.f32.xlu0 %v944
        %v976 = vpop.xlane.xlu0 %975
        %977 = vadd.xlane.f32.xlu0 %v946
        %v978 = vpop.xlane.xlu0 %977
        %979 = vadd.xlane.f32.xlu0 %v948
        %v980 = vpop.xlane.xlu0 %979
        %981 = vadd.xlane.f32.xlu0 %v950
        %v982 = vpop.xlane.xlu0 %981
        %983 = vadd.xlane.f32.xlu0 %v952
        %v984 = vpop.xlane.xlu0 %983
        %985 = vadd.xlane.f32.xlu0 %v954
        %v986 = vpop.xlane.xlu0 %985
        %987 = vadd.xlane.f32.xlu0 %v956
        %v988 = vpop.xlane.xlu0 %987
        %v989 = vrcp.pop %v958
        %v990 = vmul.f32 %v926, %v989
        %v991 = vrcp.pop %v960
        %v992 = vmul.f32 %v928, %v991
        %v993 = vrcp.pop %v962
        %v994 = vmul.f32 %v930, %v993
        %v995 = vrcp.pop %v964
        %v996 = vmul.f32 %v932, %v995
        %v997 = vrcp.pop %v966
        %v998 = vmul.f32 %v934, %v997
        %v999 = vrcp.pop %v968
        %v1000 = vmul.f32 %v936, %v999
        %v1001 = vrcp.pop %v970
        %v1002 = vmul.f32 %v938, %v1001
        %v1003 = vrcp.pop %v972
        %v1004 = vmul.f32 %v940, %v1003
        %v1005 = vrcp.pop %v974
        %v1006 = vmul.f32 %v942, %v1005
        %v1007 = vrcp.pop %v976
        %v1008 = vmul.f32 %v944, %v1007
        %v1009 = vrcp.pop %v978
        %v1010 = vmul.f32 %v946, %v1009
        %v1011 = vrcp.pop %v980
        %v1012 = vmul.f32 %v948, %v1011
        %v1013 = vrcp.pop %v982
        %v1014 = vmul.f32 %v950, %v1013
        %v1015 = vrcp.pop %v984
        %v1016 = vmul.f32 %v952, %v1015
        %v1017 = vrcp.pop %v986
        %v1018 = vmul.f32 %v954, %v1017
        %v1019 = vrcp.pop %v988
        %v1020 = vmul.f32 %v956, %v1019
        %1021 = vmatprep.subr.mxu0 0.0
        %1022 = vmatpush1.msra.mxu0 %v463
        %1023 = vmatprep.subr.mxu0 0.0
        %1024 = vmatpush1.msra.mxu0 %v464
        %1025 = vmatprep.subr.mxu0 0.0
        %1026 = vmatpush1.msra.mxu0 %v465
        %1027 = vmatprep.subr.mxu0 0.0
        %1028 = vmatpush1.msra.mxu0 %v466
        %1029 = vmatprep.subr.mxu0 0.0
        %1030 = vmatpush1.msra.mxu0 %v467
        %1031 = vmatprep.subr.mxu0 0.0
        %1032 = vmatpush1.msra.mxu0 %v468
        %1033 = vmatprep.subr.mxu0 0.0
        %1034 = vmatpush1.msra.mxu0 %v469
        %1035 = vmatprep.subr.mxu0 0.0
        %1036 = vmatpush1.msra.mxu0 %v470
        %1037 = vmatprep.subr.mxu0 0.0
        %1038 = vmatpush1.msra.mxu0 %v471
        %1039 = vmatprep.subr.mxu0 0.0
        %1040 = vmatpush1.msra.mxu0 %v472
        %1041 = vmatprep.subr.mxu0 0.0
        %1042 = vmatpush1.msra.mxu0 %v473
        %1043 = vmatprep.subr.mxu0 0.0
        %1044 = vmatpush1.msra.mxu0 %v474
        %1045 = vmatprep.subr.mxu0 0.0
        %1046 = vmatpush1.msra.mxu0 %v475
        %1047 = vmatprep.subr.mxu0 0.0
        %1048 = vmatpush1.msra.mxu0 %v476
        %1049 = vmatprep.subr.mxu0 0.0
        %1050 = vmatpush1.msra.mxu0 %v477
        %1051 = vmatprep.subr.mxu0 0.0
        %1052 = vmatpush1.msra.mxu0 %v478
        %1053 = vmatprep.subr.mxu0 0.0
        %1054 = vmatpush1.msra.mxu0 0.0
        %1055 = vmatprep.subr.mxu0 0.0
        %1056 = vmatpush1.msra.mxu0 0.0
        %1057 = vmatprep.subr.mxu0 0.0
        %1058 = vmatpush1.msra.mxu0 0.0
        %1059 = vmatprep.subr.mxu0 0.0
        %1060 = vmatpush1.msra.mxu0 0.0
        %1061 = vmatprep.subr.mxu0 0.0
        %1062 = vmatpush1.msra.mxu0 0.0
        %1063 = vmatprep.subr.mxu0 0.0
        %1064 = vmatpush1.msra.mxu0 0.0
        %1065 = vmatprep.subr.mxu0 0.0
        %1066 = vmatpush1.msra.mxu0 0.0
        %1067 = vmatprep.subr.mxu0 0.0
        %1068 = vmatpush1.msra.mxu0 0.0
        %1069 = vmatprep.subr.mxu0 0.0
        %1070 = vmatpush1.msra.mxu0 0.0
        %1071 = vmatprep.subr.mxu0 0.0
        %1072 = vmatpush1.msra.mxu0 0.0
        %1073 = vmatprep.subr.mxu0 0.0
        %1074 = vmatpush1.msra.mxu0 0.0
        %1075 = vmatprep.subr.mxu0 0.0
        %1076 = vmatpush1.msra.mxu0 0.0
        %1077 = vmatprep.subr.mxu0 0.0
        %1078 = vmatpush1.msra.mxu0 0.0
        %1079 = vmatprep.subr.mxu0 0.0
        %1080 = vmatpush1.msra.mxu0 0.0
        %1081 = vmatprep.subr.mxu0 0.0
        %1082 = vmatpush1.msra.mxu0 0.0
        %1083 = vmatprep.subr.mxu0 0.0
        %1084 = vmatpush1.msra.mxu0 0.0
        %1085 = vmatprep.mubr.f32.mxu0 0.0
        %1086 = vmatmul.mubr.f32.gmra.mrb[0].mxu0 %v990
        %v1087 = vpop.f32.mrb[0].mxu0
        %v1088 = vadd.f32 0.0, %v1087
        %v1089 = vpop.f32.mrb[0].mxu0
        %1090 = vmatprep.mubr.f32.mxu0 0.0
        %1091 = vmatmul.mubr.f32.gmra.mrb[0].mxu0 %v992
        %v1092 = vpop.f32.mrb[0].mxu0
        %v1093 = vadd.f32 0.0, %v1092
        %v1094 = vpop.f32.mrb[0].mxu0
        %1095 = vmatprep.mubr.f32.mxu0 0.0
        %1096 = vmatmul.mubr.f32.gmra.mrb[0].mxu0 %v994
        %v1097 = vpop.f32.mrb[0].mxu0
        %v1098 = vadd.f32 0.0, %v1097
        %v1099 = vpop.f32.mrb[0].mxu0
        %1100 = vmatprep.mubr.f32.mxu0 0.0
        %1101 = vmatmul.mubr.f32.gmra.mrb[0].mxu0 %v996
        %v1102 = vpop.f32.mrb[0].mxu0
        %v1103 = vadd.f32 0.0, %v1102
        %v1104 = vpop.f32.mrb[0].mxu0
        %1105 = vmatprep.mubr.f32.mxu0 0.0
        %1106 = vmatmul.mubr.f32.gmra.mrb[0].mxu0 %v998
        %v1107 = vpop.f32.mrb[0].mxu0
        %v1108 = vadd.f32 0.0, %v1107
        %v1109 = vpop.f32.mrb[0].mxu0
        %1110 = vmatprep.mubr.f32.mxu0 0.0
        %1111 = vmatmul.mubr.f32.gmra.mrb[0].mxu0 %v1000
        %v1112 = vpop.f32.mrb[0].mxu0
        %v1113 = vadd.f32 0.0, %v1112
        %v1114 = vpop.f32.mrb[0].mxu0
        %1115 = vmatprep.mubr.f32.mxu0 0.0
        %1116 = vmatmul.mubr.f32.gmra.mrb[0].mxu0 %v1002
        %v1117 = vpop.f32.mrb[0].mxu0
        %v1118 = vadd.f32 0.0, %v1117
        %v1119 = vpop.f32.mrb[0].mxu0
        %1120 = vmatprep.mubr.f32.mxu0 0.0
        %1121 = vmatmul.mubr.f32.gmra.mrb[0].mxu0 %v1004
        %v1122 = vpop.f32.mrb[0].mxu0
        %v1123 = vadd.f32 0.0, %v1122
        %v1124 = vpop.f32.mrb[0].mxu0
        %1125 = vmatprep.mubr.f32.mxu0 0.0
        %1126 = vmatmul.mubr.f32.gmra.mrb[0].mxu0 %v1006
        %v1127 = vpop.f32.mrb[0].mxu0
        %v1128 = vadd.f32 0.0, %v1127
        %v1129 = vpop.f32.mrb[0].mxu0
        %1130 = vmatprep.mubr.f32.mxu0 0.0
        %1131 = vmatmul.mubr.f32.gmra.mrb[0].mxu0 %v1008
        %v1132 = vpop.f32.mrb[0].mxu0
        %v1133 = vadd.f32 0.0, %v1132
        %v1134 = vpop.f32.mrb[0].mxu0
        %1135 = vmatprep.mubr.f32.mxu0 0.0
        %1136 = vmatmul.mubr.f32.gmra.mrb[0].mxu0 %v1010
        %v1137 = vpop.f32.mrb[0].mxu0
        %v1138 = vadd.f32 0.0, %v1137
        %v1139 = vpop.f32.mrb[0].mxu0
        %1140 = vmatprep.mubr.f32.mxu0 0.0
        %1141 = vmatmul.mubr.f32.gmra.mrb[0].mxu0 %v1012
        %v1142 = vpop.f32.mrb[0].mxu0
        %v1143 = vadd.f32 0.0, %v1142
        %v1144 = vpop.f32.mrb[0].mxu0
        %1145 = vmatprep.mubr.f32.mxu0 0.0
        %1146 = vmatmul.mubr.f32.gmra.mrb[0].mxu0 %v1014
        %v1147 = vpop.f32.mrb[0].mxu0
        %v1148 = vadd.f32 0.0, %v1147
        %v1149 = vpop.f32.mrb[0].mxu0
        %1150 = vmatprep.mubr.f32.mxu0 0.0
        %1151 = vmatmul.mubr.f32.gmra.mrb[0].mxu0 %v1016
        %v1152 = vpop.f32.mrb[0].mxu0
        %v1153 = vadd.f32 0.0, %v1152
        %v1154 = vpop.f32.mrb[0].mxu0
        %1155 = vmatprep.mubr.f32.mxu0 0.0
        %1156 = vmatmul.mubr.f32.gmra.mrb[0].mxu0 %v1018
        %v1157 = vpop.f32.mrb[0].mxu0
        %v1158 = vadd.f32 0.0, %v1157
        %v1159 = vpop.f32.mrb[0].mxu0
        %1160 = vmatprep.mubr.f32.mxu0 0.0
        %1161 = vmatmul.mubr.f32.gmra.mrb[0].mxu0 %v1020
        %v1162 = vpop.f32.mrb[0].mxu0
        %v1163 = vadd.f32 0.0, %v1162
        %v1164 = vpop.f32.mrb[0].mxu0
        %1165 = vdwg.mxu0
        %1166 = vst [vmem:[%s367] sm:$0xff] %v990
        %1167 = vst [vmem:[%s367 + $0x8] sm:$0xff] %v992
        %1168 = vst [vmem:[%s367 + $0x10] sm:$0xff] %v994
        %1169 = vst [vmem:[%s367 + $0x18] sm:$0xff] %v996
        %1170 = vst [vmem:[%s367 + $0x20] sm:$0xff] %v998
        %1171 = vst [vmem:[%s367 + $0x28] sm:$0xff] %v1000
        %1172 = vst [vmem:[%s367 + $0x30] sm:$0xff] %v1002
        %1173 = vst [vmem:[%s367 + $0x38] sm:$0xff] %v1004
        %1174 = vst [vmem:[%s367 + $0x40] sm:$0xff] %v1006
        %1175 = vst [vmem:[%s367 + $0x48] sm:$0xff] %v1008
        %1176 = vst [vmem:[%s367 + $0x50] sm:$0xff] %v1010
        %1177 = vst [vmem:[%s367 + $0x58] sm:$0xff] %v1012
        %1178 = vst [vmem:[%s367 + $0x60] sm:$0xff] %v1014
        %1179 = vst [vmem:[%s367 + $0x68] sm:$0xff] %v1016
        %1180 = vst [vmem:[%s367 + $0x70] sm:$0xff] %v1018
        %1181 = vst [vmem:[%s367 + $0x78] sm:$0xff] %v1020
        %1182 = vst.msk [vmem:[%s426] sm:$0xff] %vm499, %v1088
        %1183 = vst.msk [vmem:[%s426 + $0x8] sm:$0xff] %vm499, %v1093
        %1184 = vst.msk [vmem:[%s426 + $0x10] sm:$0xff] %vm499, %v1098
        %1185 = vst.msk [vmem:[%s426 + $0x18] sm:$0xff] %vm499, %v1103
        %1186 = vst.msk [vmem:[%s426 + $0x20] sm:$0xff] %vm499, %v1108
        %1187 = vst.msk [vmem:[%s426 + $0x28] sm:$0xff] %vm499, %v1113
        %1188 = vst.msk [vmem:[%s426 + $0x30] sm:$0xff] %vm499, %v1118
        %1189 = vst.msk [vmem:[%s426 + $0x38] sm:$0xff] %vm499, %v1123
        %1190 = vst.msk [vmem:[%s426 + $0x40] sm:$0xff] %vm499, %v1128
        %1191 = vst.msk [vmem:[%s426 + $0x48] sm:$0xff] %vm499, %v1133
        %1192 = vst.msk [vmem:[%s426 + $0x50] sm:$0xff] %vm499, %v1138
        %1193 = vst.msk [vmem:[%s426 + $0x58] sm:$0xff] %vm499, %v1143
        %1194 = vst.msk [vmem:[%s426 + $0x60] sm:$0xff] %vm499, %v1148
        %1195 = vst.msk [vmem:[%s426 + $0x68] sm:$0xff] %vm499, %v1153
        %1196 = vst.msk [vmem:[%s426 + $0x70] sm:$0xff] %vm499, %v1158
        %1197 = vst.msk [vmem:[%s426 + $0x78] sm:$0xff] %vm499, %v1163
        %s1198 = smul.u32 16, %s27
        %p1199 = scmp.lt.s32.totalorder %s25, 1
        %s1200 = scalar_select %p1199, %s25, 1
        %p1201 = scmp.lt.s32.totalorder %s26, 1
        %s1202 = scalar_select %p1201, %s26, 1
        %p1203 = scmp.lt.s32.totalorder %s1198, 15
        %s1204 = scalar_select %p1203, %s1198, 15
        %s1205 = smul.addr %s1202, 16
        %s1206 = sadd.s32 %s1204, %s1205
        %s1207 = smul.addr %s1200, 32
        %s1208 = sadd.s32 %s1206, %s1207
        %s1209 = smul.addr %s1208, 8
        %s1210 = scalar_lea.vmem %s4, %s1209
        %s1211 = sand.u32 %s197, 1
        %s1212 = scalar_lea.sflag [#allocation3], %s1211
        %s1213 = sand.u32 %s197, 1
        %s1214 = smul.addr %s1213, 128
        %s1215 = scalar_lea.vmem [#allocation2], %s1214
        // Predicated region
        $region37: #{tpu_custom_call.1} parent=35 // pred_check
          %p1216 = pneg %p177
        $region38: #{tpu_custom_call.1} parent=35 // pred_check_branch
          %1218 = sbr.rel (%p1216) target = $region40
        $region39: #{tpu_custom_call.1} parent=35 // pred_region
          %s1219 = smul.u32 16, %s27
        $region40: #{tpu_custom_call.1} parent=35 // pred_fallthru
          _
        // Predicated region
        $region41: #{tpu_custom_call.1} parent=35 // pred_check
          %p1220 = pneg %p207
        $region42: #{tpu_custom_call.1} parent=35 // pred_check_branch
          %1222 = sbr.rel (%p1220) target = $region44
        $region43: #{tpu_custom_call.1} parent=35 // pred_region
          %s1223 = smul.u32 16, %s27
          %s1225 = ssub.s32 2048, 2048
          %1226 = vsyncadd %s1212, %s1225
          %s1227 = smul.addr %s26, 16
          %s1228 = sadd.s32 %s1223, %s1227
          %s1229 = smul.addr %s25, 32
          %s1230 = sadd.s32 %s1228, %s1229
          %s1231 = smul.addr %s1230, 128
          %s1232 = scalar_lea.hbm %s5, %s1231
          %s1233 = sshll.u32 %s1215, 4
          %s1234 = int_to_ptr.vmem [resolvable:$true] %s1233
          %1239 = dma.vmem_to_hbm [thread:$0]  %s1234, 2048, %s1232, %s1212, 128, 128, 8
        $region44: #{tpu_custom_call.1} parent=35 // pred_fallthru
          _
      $region36: #{tpu_custom_call.1} parent=5 // pred_fallthru
        _
      %p1240 = scmp.le.s32.totalorder 2, %s15
      // Predicated region
      $region45: #{tpu_custom_call.1} parent=5 // pred_check
        %p1241 = pneg %p1240
      $region46: #{tpu_custom_call.1} parent=5 // pred_check_branch
        %1243 = sbr.rel (%p1241) target = $region48
      $region47: #{tpu_custom_call.1} parent=5 // pred_region
        %s1244 = ssub.s32 %s15, 2
        // Predicated region
        $region49: #{tpu_custom_call.1} parent=47 // pred_check
          %p1245 = pneg %p183
        $region50: #{tpu_custom_call.1} parent=47 // pred_check_branch
          %1247 = sbr.rel (%p1245) target = $region52
        $region51: #{tpu_custom_call.1} parent=47 // pred_region
          %s1248 = smul.u32 16, %s30
          %p1249 = scmp.lt.s32.totalorder %s28, 1
          %s1250 = scalar_select %p1249, %s28, 1
          %p1251 = scmp.lt.s32.totalorder %s29, 1
          %s1252 = scalar_select %p1251, %s29, 1
          %p1253 = scmp.lt.s32.totalorder %s1248, 15
          %s1254 = scalar_select %p1253, %s1248, 15
          %s1255 = smul.addr %s1252, 16
          %s1256 = sadd.s32 %s1254, %s1255
          %s1257 = smul.addr %s1250, 32
          %s1258 = sadd.s32 %s1256, %s1257
          %s1259 = smul.addr %s1258, 8
          %s1260 = scalar_lea.vmem %s4, %s1259
        $region52: #{tpu_custom_call.1} parent=47 // pred_fallthru
          _
        // Predicated region
        $region53: #{tpu_custom_call.1} parent=47 // pred_check
          %p1261 = pneg %p213
        $region54: #{tpu_custom_call.1} parent=47 // pred_check_branch
          %1263 = sbr.rel (%p1261) target = $region56
        $region55: #{tpu_custom_call.1} parent=47 // pred_region
          %s1264 = sand.u32 %s198, 1
          %s1265 = scalar_lea.sflag [#allocation3], %s1264
          %s1266 = sand.u32 %s198, 1
          %s1267 = smul.addr %s1266, 128
          %s1268 = scalar_lea.vmem [#allocation2], %s1267
          %1269 = dma.done %s1265, 2048
        $region56: #{tpu_custom_call.1} parent=47 // pred_fallthru
          _
      $region48: #{tpu_custom_call.1} parent=5 // pred_fallthru
        _
    $region6: #{tpu_custom_call.1} parent=1 // loop_footer
      %s19 = sadd.s32 1, %s15
    $region7: #{tpu_custom_call.1} parent=1 // loop_footer_branch
      %14 = sbr.rel target = $region3
    $region8: #{tpu_custom_call.1} parent=1 // loop_exit
      _
    %1270 = vsyncpa [#allocation3], 1
    %s1271 = scalar_lea.sflag [#allocation3], 1
    %1272 = vsyncpa %s1271, 1

</llo_original>
